<compile_context>
chip_gen: v7x
topology: tpu7x:2x2x1
jax: 0.10.0
libtpu: 0.0.40
codegen_flags: <defaults>
</compile_context>

<pallas_src>
import jax
import jax.numpy as jnp
from jax.experimental import pallas as pl
from jax.experimental.pallas import tpu as pltpu


def _cf_kernel(x_ref, y_ref, out_ref):
    # x/y: (F+2, TB) float32 — factors (+ folded biases) on sublanes, batch on lanes.
    prod = x_ref[...] * y_ref[...]                                   # VPU
    out_ref[...] = jnp.sum(prod, axis=0, keepdims=True).astype(out_ref.dtype)  # (1, TB)


def simple_cf_forward(users, items, params, *, block_b=1024):
    """Pallas forward pass for SimpleCFWithBias (inference, dropout_p=0)."""
    user_emb = params["user_embeddings"]   # (n_users, F)
    user_bias = params["user_biases"]      # (n_users, 1)
    item_emb = params["item_embeddings"]   # (n_items, F)
    item_bias = params["item_biases"]      # (n_items, 1)

    B = users.shape[0]
    num_blocks = pl.cdiv(B, block_b)
    Bp = num_blocks * block_b
    if Bp != B:
        # Pad indices with 0 (valid rows); padded outputs are sliced off below.
        pad = Bp - B
        users = jnp.concatenate([users, jnp.zeros((pad,), users.dtype)])
        items = jnp.concatenate([items, jnp.zeros((pad,), items.dtype)])

    # Glue: embedding lookups (row gathers) + transposed, bias-folded layout.
    #   x = [user_emb.T ; user_bias.T ; 1]   shape (F+2, Bp)
    #   y = [item_emb.T ; 1 ; item_bias.T]   shape (F+2, Bp)
    # so that sum(x * y, axis=0) = dot + user_bias + item_bias.
    ue_t = jnp.take(user_emb, users, axis=0).astype(jnp.float32).T   # (F, Bp)
    ie_t = jnp.take(item_emb, items, axis=0).astype(jnp.float32).T   # (F, Bp)
    ub_r = jnp.take(user_bias, users, axis=0).astype(jnp.float32).T  # (1, Bp)
    ib_r = jnp.take(item_bias, items, axis=0).astype(jnp.float32).T  # (1, Bp)
    ones = jnp.ones_like(ub_r)
    x = jnp.concatenate([ue_t, ub_r, ones], axis=0)                  # (F+2, Bp)
    y = jnp.concatenate([ie_t, ones, ib_r], axis=0)                  # (F+2, Bp)

    Fp2 = x.shape[0]

    out = pl.pallas_call(
        _cf_kernel,
        out_shape=jax.ShapeDtypeStruct((1, Bp), jnp.float32),
        grid_spec=pltpu.PrefetchScalarGridSpec(
            num_scalar_prefetch=0,
            grid=(num_blocks,),
            in_specs=[
                # First block dim equals the full (F+2) extent; second is a
                # multiple of 128 -> lane-dense loads.
                pl.BlockSpec((Fp2, block_b), lambda i: (0, i)),
                pl.BlockSpec((Fp2, block_b), lambda i: (0, i)),
            ],
            # Lane-dense (1, block_b) output row per step -> unmasked stores.
            out_specs=pl.BlockSpec((1, block_b), lambda i: (0, i)),
        ),
        compiler_params=pltpu.CompilerParams(
            # Single mem-bound streaming axis; "parallel" lets v7x split it
            # across both TensorCores.
            dimension_semantics=("parallel",),
        ),
    )(x, y)

    return out.reshape(Bp)[:B]   # matches torch `.squeeze()` -> (B,)


def init_params(key, n_users, n_items, n_factors):
    """Deterministic stand-in for nn.init.normal_ on all embedding tables."""
    k1, k2, k3, k4 = jax.random.split(key, 4)
    return {
        "user_embeddings": jax.random.normal(k1, (n_users, n_factors), jnp.float32),
        "user_biases": jax.random.normal(k2, (n_users, 1), jnp.float32),
        "item_embeddings": jax.random.normal(k3, (n_items, n_factors), jnp.float32),
        "item_biases": jax.random.normal(k4, (n_items, 1), jnp.float32),
    }


def _reference(users, items, params):
    ue = params["user_embeddings"][users]
    ie = params["item_embeddings"][items]
    ub = params["user_biases"][users]
    ib = params["item_biases"][items]
    return (ub + ib + jnp.sum(ue * ie, axis=1, keepdims=True)).squeeze(-1)


if __name__ == "__main__":
    n_users, n_items, n_factors = 64, 48, 40
    batch = 8

    key = jax.random.PRNGKey(0)
    kp, ku, ki = jax.random.split(key, 3)
    params = init_params(kp, n_users, n_items, n_factors)
    users = jax.random.randint(ku, (batch,), 0, n_users, dtype=jnp.int32)
    items = jax.random.randint(ki, (batch,), 0, n_items, dtype=jnp.int32)

    # Small demo: block_b=256 exercises the padding path (batch=8 -> padded to 256);
    # production batches should use the default 1024 (or sweep 512-2048).
    preds = simple_cf_forward(users, items, params, block_b=256)
    preds = jax.block_until_ready(preds)

    ref = _reference(users, items, params)
    assert preds.shape == (batch,)
    assert jnp.allclose(preds, ref, atol=1e-5, rtol=1e-5), "mismatch vs JAX reference"

    print("KERNEL_OK")
</pallas_src>

<mosaic_0001>
module attributes {stable_mosaic.version = 11 : i64} {
  func.func @_cf_kernel(%arg0: i32, %arg1: memref<42x256xf32, #tpu.memory_space<vmem>>, %arg2: memref<42x256xf32, #tpu.memory_space<vmem>>, %arg3: memref<1x256xf32, #tpu.memory_space<vmem>>) attributes {dimension_semantics = [#tpu.dimension_semantics<parallel>], iteration_bounds = array<i64: 1>, scalar_prefetch = 0 : i64, scratch_operands = 0 : i64, tpu.core_type = #tpu.core_type<tc>, window_params = [{transform_indices = @transform_0, window_bounds = array<i64: 42, 256>}, {transform_indices = @transform_1, window_bounds = array<i64: 42, 256>}, {transform_indices = @transform_2, window_bounds = array<i64: 1, 256>}]} {
    %c0 = arith.constant 0 : index
    %c0_0 = arith.constant 0 : index
    %0 = vector.load %arg1[%c0, %c0_0] : memref<42x256xf32, #tpu.memory_space<vmem>>, vector<42x256xf32>
    %c0_1 = arith.constant 0 : index
    %c0_2 = arith.constant 0 : index
    %1 = vector.load %arg2[%c0_1, %c0_2] : memref<42x256xf32, #tpu.memory_space<vmem>>, vector<42x256xf32>
    %2 = arith.mulf %0, %1 : vector<42x256xf32>
    %cst = arith.constant dense<0.000000e+00> : vector<256xf32>
    %3 = vector.multi_reduction <add>, %2, %cst [0] : vector<42x256xf32> to vector<256xf32>
    %4 = vector.shape_cast %3 : vector<256xf32> to vector<1x256xf32>
    %c0_3 = arith.constant 0 : index
    %c0_4 = arith.constant 0 : index
    %5 = vector.load %arg3[%c0_3, %c0_4] : memref<1x256xf32, #tpu.memory_space<vmem>>, vector<1x256xf32>
    tpu.vector_store %arg3[%c0_3, %c0_4], %4 {strides = array<i32>} : memref<1x256xf32, #tpu.memory_space<vmem>>, vector<1x256xf32>,
    return
  }
  func.func @transform_0(%arg0: i32) -> (i32, i32) {
    %c0_i32 = arith.constant 0 : i32
    %c0_i32_0 = arith.constant 0 : i32
    return %c0_i32, %arg0 : i32, i32
  }
  func.func @transform_1(%arg0: i32) -> (i32, i32) {
    %c0_i32 = arith.constant 0 : i32
    %c0_i32_0 = arith.constant 0 : i32
    return %c0_i32, %arg0 : i32, i32
  }
  func.func @transform_2(%arg0: i32) -> (i32, i32) {
    %c0_i32 = arith.constant 0 : i32
    %c0_i32_0 = arith.constant 0 : i32
    return %c0_i32, %arg0 : i32, i32
  }
}

</mosaic_0001>

<llo_original>
// kernel: tpu_custom_call.1
$region0: #{tpu_custom_call.1}
  #allocation0 [shape = 'u32[]', space=smem, size = 0x4, offset = 0x4, fixed_abs, tag = 'smem constant byte address 0x4 - core index']
  #allocation1 [shape = 'u32[144,128]{1,0:T(1,128)}', space=vmem, size = 0x12000, scoped, tag = 'internal scratch']
  %s0 = inlined_call_operand.hbm [shape: f32[42,256], index: 0, kind: input, shape index: {}]
  %s1 = inlined_call_operand.hbm [shape: f32[42,256], index: 1, kind: input, shape index: {}]
  %s2 = inlined_call_operand.hbm [shape: f32[1,256], index: 2, kind: output, shape index: {}]
  %s3 = sld [smem:[#allocation0]]
  $region26: #{tpu_custom_call.1} parent=0
    _
  %s5 = ssub.s32 1, %s3
  %s6 = scalar_select 0, %s5, %s3
  $region1: #{tpu_custom_call.1} parent=0
    #allocation2 [shape = 'u8[49152]{0}', space=vmem, size = 0xc000, scoped, tag = 'input window, operand 0, single buffered']
    #allocation3 [shape = 's32[1]{0}', space=sflag, size = 0x4, scoped, tag = 'scoped memory for tpu_custom_call.1']
    #allocation4 [shape = 's32[1]{0}', space=sflag, size = 0x4, scoped, tag = 'scoped memory for tpu_custom_call.1']
    #allocation5 [shape = 'u8[49152]{0}', space=vmem, size = 0xc000, scoped, tag = 'input window, operand 1, single buffered']
    #allocation6 [shape = 's32[1]{0}', space=sflag, size = 0x4, scoped, tag = 'scoped memory for tpu_custom_call.1']
    #allocation7 [shape = 'u8[1024]{0}', space=vmem, size = 0x400, scoped, tag = 'output window, operand 0, single buffered']
    %7 = vsyncpa [#allocation3], 0
    %8 = vsyncpa [#allocation6], 0
    %9 = vsyncpa [#allocation4], 0
    // Predicated region
    $region2: #{tpu_custom_call.1} parent=1 // pred_check
      _
    $region3: #{tpu_custom_call.1} parent=1 // pred_check_branch
      %11 = sbr.rel (0) target = $region5
    $region4: #{tpu_custom_call.1} parent=1 // pred_region
      %s13 = ssub.s32 1536, 1536
      %14 = vsyncadd [#allocation3], %s13
      %s15 = sshll.u32 [#allocation2], 4
      %s16 = int_to_ptr.vmem [resolvable:$true] %s15
      %21 = dma.hbm_to_vmem [thread:$0]  %s0, 1536, %s16, [#allocation3], 256, 256, 16
    $region5: #{tpu_custom_call.1} parent=1 // pred_fallthru
      _
    // Predicated region
    $region6: #{tpu_custom_call.1} parent=1 // pred_check
      _
    $region7: #{tpu_custom_call.1} parent=1 // pred_check_branch
      %23 = sbr.rel (0) target = $region9
    $region8: #{tpu_custom_call.1} parent=1 // pred_region
      %s25 = ssub.s32 1536, 1536
      %26 = vsyncadd [#allocation6], %s25
      %s27 = sshll.u32 [#allocation5], 4
      %s28 = int_to_ptr.vmem [resolvable:$true] %s27
      %33 = dma.hbm_to_vmem [thread:$0]  %s1, 1536, %s28, [#allocation6], 256, 256, 16
    $region9: #{tpu_custom_call.1} parent=1 // pred_fallthru
      _
    // Predicated region
    $region10: #{tpu_custom_call.1} parent=1 // pred_check
      _
    $region11: #{tpu_custom_call.1} parent=1 // pred_check_branch
      %35 = sbr.rel (0) target = $region13
    $region12: #{tpu_custom_call.1} parent=1 // pred_region
      %36 = dma.done [#allocation3], 1536
    $region13: #{tpu_custom_call.1} parent=1 // pred_fallthru
      _
    // Predicated region
    $region14: #{tpu_custom_call.1} parent=1 // pred_check
      _
    $region15: #{tpu_custom_call.1} parent=1 // pred_check_branch
      %38 = sbr.rel (0) target = $region17
    $region16: #{tpu_custom_call.1} parent=1 // pred_region
      %39 = dma.done [#allocation6], 1536
    $region17: #{tpu_custom_call.1} parent=1 // pred_fallthru
      _
    %v40 = vld [vmem:[#allocation2] sm:$0xff]
    %v41 = vld [vmem:[#allocation2 + $0x8] sm:$0xff]
    %v42 = vld [vmem:[#allocation2 + $0x10] sm:$0xff]
    %v43 = vld [vmem:[#allocation2 + $0x18] sm:$0xff]
    %v44 = vld [vmem:[#allocation2 + $0x20] sm:$0xff]
    %v45 = vld [vmem:[#allocation2 + $0x28] sm:$0xff]
    %v46 = vld [vmem:[#allocation2 + $0x30] sm:$0xff]
    %v47 = vld [vmem:[#allocation2 + $0x38] sm:$0xff]
    %v48 = vld [vmem:[#allocation2 + $0x40] sm:$0xff]
    %v49 = vld [vmem:[#allocation2 + $0x48] sm:$0xff]
    %v50 = vld [vmem:[#allocation2 + $0x50] sm:$0x3]
    %v51 = vld [vmem:[#allocation2 + $0x58] sm:$0x3]
    %v52 = vld [vmem:[#allocation5] sm:$0xff]
    %v53 = vld [vmem:[#allocation5 + $0x8] sm:$0xff]
    %v54 = vld [vmem:[#allocation5 + $0x10] sm:$0xff]
    %v55 = vld [vmem:[#allocation5 + $0x18] sm:$0xff]
    %v56 = vld [vmem:[#allocation5 + $0x20] sm:$0xff]
    %v57 = vld [vmem:[#allocation5 + $0x28] sm:$0xff]
    %v58 = vld [vmem:[#allocation5 + $0x30] sm:$0xff]
    %v59 = vld [vmem:[#allocation5 + $0x38] sm:$0xff]
    %v60 = vld [vmem:[#allocation5 + $0x40] sm:$0xff]
    %v61 = vld [vmem:[#allocation5 + $0x48] sm:$0xff]
    %v62 = vld [vmem:[#allocation5 + $0x50] sm:$0x3]
    %v63 = vld [vmem:[#allocation5 + $0x58] sm:$0x3]
    %v64 = vmul.f32 %v40, %v52
    %v65 = vmul.f32 %v41, %v53
    %v66 = vmul.f32 %v42, %v54
    %v67 = vmul.f32 %v43, %v55
    %v68 = vmul.f32 %v44, %v56
    %v69 = vmul.f32 %v45, %v57
    %v70 = vmul.f32 %v46, %v58
    %v71 = vmul.f32 %v47, %v59
    %v72 = vmul.f32 %v48, %v60
    %v73 = vmul.f32 %v49, %v61
    %v74 = vmul.f32 %v50, %v62
    %v75 = vmul.f32 %v51, %v63
    %v76 = vadd.f32 %v64, %v66
    %v77 = vadd.f32 %v76, %v68
    %v78 = vadd.f32 %v77, %v70
    %v79 = vadd.f32 %v78, %v72
    %vm80 = vcmask 1041408
    %v81 = vsel %vm80, %v74, 0.0
    %v82 = vadd.f32 %v79, %v81
    %v83 = vrot.slane %v82, 4
    %v84 = vadd.f32 %v82, %v83
    %v85 = vrot.slane %v84, 2
    %v86 = vadd.f32 %v84, %v85
    %v87 = vrot.slane %v86, 1
    %v88 = vadd.f32 %v86, %v87
    %v89 = vadd.f32 %v65, %v67
    %v90 = vadd.f32 %v89, %v69
    %v91 = vadd.f32 %v90, %v71
    %v92 = vadd.f32 %v91, %v73
    %v93 = vsel %vm80, %v75, 0.0
    %v94 = vadd.f32 %v92, %v93
    %v95 = vrot.slane %v94, 4
    %v96 = vadd.f32 %v94, %v95
    %v97 = vrot.slane %v96, 2
    %v98 = vadd.f32 %v96, %v97
    %v99 = vrot.slane %v98, 1
    %v100 = vadd.f32 %v98, %v99
    %v103 = vcombine.low %v88, %v100
    %v105 = vunpack.c.l.s4 1966171168
    %v106 = vunpack.c.0.s8 %v105
    %v107 = vlaneseq
    %v108 = vshrl.u32 %v107, 7
    %v109 = vsub.s32 %v106, %v108
    %v110 = vrot.slane %v103, %v109
    %v112 = vunpack.c.l.s4 1966171168
    %v113 = vunpack.c.0.s8 %v112
    %v114 = vlaneseq
    %v115 = vshrl.u32 %v114, 7
    %v116 = vsub.s32 %v113, %v115
    %v117 = vrot.slane %v110, %v116
    %v119 = vlaneseq
    %vm120 = vcmp.ge.s32.totalorder %v119, 0
    %vm121 = vcmp.lt.s32.totalorder %v119, 256
    %vm122 = vmand %vm120, %vm121
    %123 = vst.msk [vmem:[#allocation7] sm:$0x3] %vm122, %v117
    // Predicated region
    $region18: #{tpu_custom_call.1} parent=1 // pred_check
      _
    $region19: #{tpu_custom_call.1} parent=1 // pred_check_branch
      %125 = sbr.rel (0) target = $region21
    $region20: #{tpu_custom_call.1} parent=1 // pred_region
      %s127 = ssub.s32 32, 32
      %128 = vsyncadd [#allocation4], %s127
      %s130 = sshll.u32 [#allocation7], 4
      %s131 = int_to_ptr.vmem [resolvable:$true] %s130
      %133 = dma.vmem_to_hbm [thread:$0]  %s131, 32, %s2, [#allocation4]
    $region21: #{tpu_custom_call.1} parent=1 // pred_fallthru
      _
    // Predicated region
    $region22: #{tpu_custom_call.1} parent=1 // pred_check
      _
    $region23: #{tpu_custom_call.1} parent=1 // pred_check_branch
      %135 = sbr.rel (0) target = $region25
    $region24: #{tpu_custom_call.1} parent=1 // pred_region
      %136 = dma.done [#allocation4], 32
    $region25: #{tpu_custom_call.1} parent=1 // pred_fallthru
      _
    %137 = vsyncpa [#allocation3], 1
    %138 = vsyncpa [#allocation6], 1
    %139 = vsyncpa [#allocation4], 1

</llo_original>
